<compile_context>
chip_gen: v7x
topology: tpu7x:2x2x1
jax: 0.10.0
libtpu: 0.0.40
codegen_flags: <defaults>
</compile_context>

<pallas_src>
import math
from functools import partial

import numpy as np
import jax
import jax.numpy as jnp
from jax import lax
from jax.experimental import pallas as pl
from jax.experimental.pallas import tpu as pltpu


def _round_up(a, b):
    return ((a + b - 1) // b) * b


# ----------------------------------------------------------------------------
# Pallas MLP kernel (lane-packed, mask fused)
# ----------------------------------------------------------------------------
def _mlp_kernel(num_layers, use_tanh_gelu, x_ref, rem_ref, *rest):
    # rest = (w0, b0, w1, b1, ..., out_ref)
    out_ref = rest[-1]
    params = rest[:-1]

    x = x_ref[...].astype(jnp.float32)                 # (row_tile, F*P)
    # Fused validity masking: lane l of a packed row is position
    # (row_base + l) of its batch; rem_ref holds (valid_len - row_base).
    lane = lax.broadcasted_iota(jnp.int32, x.shape, dimension=1)
    h = jnp.where(lane < rem_ref[...], x, 0.0)

    inv_sqrt2 = 1.0 / math.sqrt(2.0)
    for l in range(num_layers):
        w = params[2 * l][...].astype(jnp.float32)      # (F*in, F*out) block-diag
        b = params[2 * l + 1][...].astype(jnp.float32)  # (1, F*out)
        h = jnp.dot(h, w, preferred_element_type=jnp.float32) + b
        if l < num_layers - 1:
            if use_tanh_gelu:
                # tanh-GELU hits the EUP slot (v6e/v7x); not exact torch parity.
                h = jax.nn.gelu(h, approximate=True)
            else:
                # exact (erf-based) GELU — matches torch.nn.GELU() default
                h = 0.5 * h * (1.0 + lax.erf(h * inv_sqrt2))
    out_ref[...] = h.astype(out_ref.dtype)


def _choose_tiling(n_rows):
    """Pick a large packed-row tile (multiple of 8, up to 2048 rows ~ 3 MB per
    step) to amortize the ~0.35us/step pipeline overhead, but keep >=2 grid
    steps whenever the input is non-trivial so the 2 TensorCores of v7x get
    sharded work via dimension_semantics=("parallel",)."""
    MAX_TILE = 2048
    if n_rows <= 8:
        row_tile = 8                                   # single tiny step
    else:
        row_tile = min(MAX_TILE, _round_up((n_rows + 1) // 2, 8))
    return row_tile, _round_up(n_rows, row_tile)


def mlp_pallas(x_packed, rem, weights, biases, *, use_tanh_gelu=False):
    """Run the (block-diagonal) MLP over lane-packed patch rows.

    x_packed: (N_rows, F*patch_size) float32, static N_rows.
    rem:      (N_rows, 1) int32 — remaining valid elements for each packed row.
    weights[l]: (F*in, F*out) block-diagonal; biases[l]: (F*out,).
    """
    n, lane_in = x_packed.shape
    lane_out = weights[-1].shape[1]
    num_layers = len(weights)

    row_tile, n_pad = _choose_tiling(n)
    if n_pad != n:
        x_packed = jnp.pad(x_packed, ((0, n_pad - n), (0, 0)))
        rem = jnp.pad(rem, ((0, n_pad - n), (0, 0)))    # rem=0 -> fully masked

    in_specs = [pl.BlockSpec((row_tile, lane_in), lambda i: (i, 0)),
                pl.BlockSpec((row_tile, 1), lambda i: (i, 0))]
    args = [x_packed, rem]
    param_bytes = 0
    for w, b in zip(weights, biases):
        b2 = b.reshape(1, -1)
        # Constant index maps -> weights/biases stay resident in VMEM (no re-DMA).
        in_specs.append(pl.BlockSpec(w.shape, lambda i: (0, 0)))
        in_specs.append(pl.BlockSpec(b2.shape, lambda i: (0, 0)))
        args.extend([w, b2])
        param_bytes += (w.size + b2.size) * 4

    flops = 2 * n_pad * (lane_in * lane_out + (num_layers - 1) * lane_out * lane_out)
    transcendentals = n_pad * lane_out * (num_layers - 1)
    bytes_accessed = n_pad * (lane_in + lane_out + 1) * 4 + param_bytes

    out = pl.pallas_call(
        partial(_mlp_kernel, num_layers, use_tanh_gelu),
        grid=(n_pad // row_tile,),
        in_specs=in_specs,
        out_specs=pl.BlockSpec((row_tile, lane_out), lambda i: (i, 0)),
        out_shape=jax.ShapeDtypeStruct((n_pad, lane_out), jnp.float32),
        compiler_params=pltpu.CompilerParams(
            dimension_semantics=("parallel",),
            vmem_limit_bytes=32 * 1024 * 1024),
        cost_estimate=pl.CostEstimate(
            flops=flops,
            transcendentals=transcendentals,
            bytes_accessed=bytes_accessed),
    )(*args)
    return out[:n]


# ----------------------------------------------------------------------------
# Module
# ----------------------------------------------------------------------------
class TimeSeriesEmbedding:
    """JAX/Pallas port of chatts TimeSeriesEmbedding."""

    def __init__(self, config, key, use_tanh_gelu=False):
        self.patch_size = config["patch_size"]
        self.num_layers = config["num_layers"]
        self.hidden_size = config["hidden_size"]
        self.num_features = config["num_features"]
        self.use_tanh_gelu = use_tanh_gelu

        # deterministic synthetic parameters (torch.nn.Linear-style uniform init)
        self.weights = []
        self.biases = []
        input_size = 1 * self.patch_size
        for _ in range(self.num_layers):
            key, wk, bk = jax.random.split(key, 3)
            bound = 1.0 / math.sqrt(input_size)
            w = jax.random.uniform(
                wk, (input_size, self.hidden_size), jnp.float32, -bound, bound)
            b = jax.random.uniform(
                bk, (self.hidden_size,), jnp.float32, -bound, bound)
            self.weights.append(w)
            self.biases.append(b)
            input_size = self.hidden_size

        # Lane packing factor: pack F patches per 128-lane row (F=8 for P=16),
        # and precompute block-diagonal weights ONCE so the packed rows stay
        # independent through every layer of the MLP.
        self.pack = 128 // self.patch_size if 128 % self.patch_size == 0 else 1
        F = self.pack
        self.weights_bd, self.biases_bd = [], []
        for w, b in zip(self.weights, self.biases):
            if F == 1:
                self.weights_bd.append(w)
                self.biases_bd.append(b)
            else:
                self.weights_bd.append(jnp.kron(jnp.eye(F, dtype=w.dtype), w))
                self.biases_bd.append(jnp.tile(b, F))

        # All static-shape device work (slab build -> Pallas MLP -> static
        # compaction gather) is jitted once.
        self._embed = jax.jit(self._embed_full)

    def _embed_full(self, x):
        """Static-shape device pass: returns the compacted patch embeddings in
        a static max-size buffer plus per-batch patch counts.  No host sync."""
        batch_size = x.shape[0]
        x = x.reshape(batch_size, -1, self.num_features)
        seq = x.shape[1]
        P = self.patch_size
        F = self.pack
        lane_w = F * P

        mask = x[:, :, -1]
        valid_lengths = jnp.sum(mask, axis=1).astype(jnp.int32)
        patch_cnt = (valid_lengths + P - 1) // P

        max_pc = (seq + P - 1) // P
        mpc_pad = _round_up(max(max_pc, F), F)          # patches/batch, padded to F
        padded_seq = mpc_pad * P
        rows_per_batch = mpc_pad // F

        # Build the lane-packed value slab (channel-0 extract + pad + reshape).
        # TODO(synk): the channel-0 de-interleave stays an XLA pre-pass; fusing
        # it into the kernel would need a lane-stride gather (XLU-bound).
        vals = x[:, :, 0]
        if padded_seq > seq:
            vals = jnp.pad(vals, ((0, 0), (0, padded_seq - seq)))
        packed = vals.reshape(batch_size * rows_per_batch, lane_w)

        # Per-packed-row remaining valid length (mask is applied in-kernel).
        rr = jnp.arange(rows_per_batch, dtype=jnp.int32)
        rem = (valid_lengths[:, None] - rr[None, :] * lane_w).reshape(-1, 1)

        out_packed = mlp_pallas(packed, rem, self.weights_bd, self.biases_bd,
                                use_tanh_gelu=self.use_tanh_gelu)
        # un-pack: (N_rows, F*H) -> (B*mpc_pad, H); slot s = b*mpc_pad + patch_idx
        out_slots = out_packed.reshape(batch_size * mpc_pad, self.hidden_size)

        # On-device, static-shape ragged compaction (no per-shape recompiles):
        # compacted row j comes from batch b = searchsorted(cumsum(pc), j) at
        # patch (j - start[b]); rows beyond the true total are junk & sliced off.
        S = batch_size * mpc_pad
        cum = jnp.cumsum(patch_cnt)
        j = jnp.arange(S, dtype=jnp.int32)
        b_idx = jnp.clip(jnp.searchsorted(cum, j, side="right"),
                         0, batch_size - 1).astype(jnp.int32)
        start = cum[b_idx] - patch_cnt[b_idx]
        src = jnp.clip(b_idx * mpc_pad + (j - start), 0, S - 1)
        compact_full = jnp.take(out_slots, src, axis=0)
        return compact_full, patch_cnt

    def __call__(self, x):
        compact_full, patch_cnt = self._embed(x)
        # TODO(synk): the ragged output row count is inherently data-dependent
        # (matches the PyTorch .item() loop); this single patch_cnt readout is
        # the only host sync, followed by a trivial contiguous slice.
        pc_np = np.asarray(jax.device_get(patch_cnt))
        total = int(pc_np.sum())
        if total > 0:
            out = compact_full[:total]
        else:
            out = jnp.zeros((0, self.hidden_size), jnp.float32)
        return out, patch_cnt


# ----------------------------------------------------------------------------
# Pure numpy reference (mirrors the PyTorch forward) for a correctness check.
# ----------------------------------------------------------------------------
def _ref_forward(module, x):
    _erf = np.vectorize(math.erf)
    xb = np.asarray(jax.device_get(x)).reshape(x.shape[0], -1, module.num_features)
    mask = xb[:, :, -1]
    vls = mask.sum(axis=1).astype(np.int64)
    pcs = (vls + module.patch_size - 1) // module.patch_size
    patches = []
    for i in range(xb.shape[0]):
        vl, pc = int(vls[i]), int(pcs[i])
        if pc == 0:
            continue
        xi = xb[i, :vl, 0]
        pad = pc * module.patch_size - vl
        if pad > 0:
            xi = np.concatenate([xi, np.zeros(pad, xi.dtype)])
        patches.append(xi.reshape(pc, module.patch_size))
    if not patches:
        return np.zeros((0, module.hidden_size), np.float32), pcs
    h = np.concatenate(patches, axis=0).astype(np.float32)
    for l in range(module.num_layers):
        w = np.asarray(jax.device_get(module.weights[l]))
        b = np.asarray(jax.device_get(module.biases[l]))
        h = h @ w + b
        if l < module.num_layers - 1:
            h = 0.5 * h * (1.0 + _erf(h / math.sqrt(2.0)))
    return h.astype(np.float32), pcs


if __name__ == "__main__":
    config = {
        "patch_size": 16,
        "num_layers": 2,
        "hidden_size": 32,
        "num_features": 2,   # channel 0 = value, last channel = validity mask
    }

    key = jax.random.PRNGKey(0)
    key, pkey, xkey, xkey2 = jax.random.split(key, 4)

    module = TimeSeriesEmbedding(config, pkey)

    # ---- small deterministic input: batch=2, seq=48, num_features=2 ----
    batch, seq = 2, 48
    x = jax.random.normal(xkey, (batch, seq, config["num_features"]), jnp.float32)
    lengths = [40, 48]  # valid lengths per batch (encoded in the mask channel)
    mask = (jnp.arange(seq)[None, :] < jnp.asarray(lengths)[:, None]).astype(jnp.float32)
    x = x.at[:, :, -1].set(mask)

    out, patch_cnt = module(x)
    out = jax.block_until_ready(out)
    patch_cnt = jax.block_until_ready(patch_cnt)

    expected_patches = sum((l + config["patch_size"] - 1) // config["patch_size"]
                           for l in lengths)
    assert out.shape == (expected_patches, config["hidden_size"]), out.shape
    assert patch_cnt.shape == (batch,), patch_cnt.shape
    assert bool(jnp.all(jnp.isfinite(out)))

    ref_out, ref_pc = _ref_forward(module, x)
    assert np.array_equal(np.asarray(jax.device_get(patch_cnt)), ref_pc.astype(np.int32))
    np.testing.assert_allclose(np.asarray(jax.device_get(out)), ref_out,
                               rtol=1e-2, atol=1e-2)

    # ---- larger input exercising the multi-grid-step lane-packed path ----
    batch2, seq2 = 4, 4096  # -> 1024 patch slots -> 128 packed rows, grid=(2,)
    x2 = jax.random.normal(xkey2, (batch2, seq2, config["num_features"]), jnp.float32)
    lengths2 = [4096, 3000, 100, 0]
    mask2 = (jnp.arange(seq2)[None, :] < jnp.asarray(lengths2)[:, None]).astype(jnp.float32)
    x2 = x2.at[:, :, -1].set(mask2)

    out2, patch_cnt2 = module(x2)
    out2 = jax.block_until_ready(out2)
    expected2 = sum((l + config["patch_size"] - 1) // config["patch_size"]
                    for l in lengths2)
    assert out2.shape == (expected2, config["hidden_size"]), out2.shape
    assert bool(jnp.all(jnp.isfinite(out2)))

    ref_out2, ref_pc2 = _ref_forward(module, x2)
    assert np.array_equal(np.asarray(jax.device_get(patch_cnt2)),
                          ref_pc2.astype(np.int32))
    np.testing.assert_allclose(np.asarray(jax.device_get(out2)), ref_out2,
                               rtol=1e-2, atol=1e-2)

    print("KERNEL_OK")
</pallas_src>

<mosaic_0001>
module attributes {stable_mosaic.version = 11 : i64} {
  func.func @_mlp_kernel(%arg0: i32, %arg1: memref<8x128xf32, #tpu.memory_space<vmem>>, %arg2: memref<8x1xi32, #tpu.memory_space<vmem>>, %arg3: memref<128x256xf32, #tpu.memory_space<vmem>>, %arg4: memref<1x256xf32, #tpu.memory_space<vmem>>, %arg5: memref<256x256xf32, #tpu.memory_space<vmem>>, %arg6: memref<1x256xf32, #tpu.memory_space<vmem>>, %arg7: memref<8x256xf32, #tpu.memory_space<vmem>>) attributes {dimension_semantics = [#tpu.dimension_semantics<parallel>], iteration_bounds = array<i64: 1>, scalar_prefetch = 0 : i64, scratch_operands = 0 : i64, tpu.core_type = #tpu.core_type<tc>, window_params = [{transform_indices = @transform_0, window_bounds = array<i64: 8, 128>}, {transform_indices = @transform_1, window_bounds = array<i64: 8, 1>}, {pipeline_mode = #tpu.pipeline_mode<synchronous>, transform_indices = @transform_2, window_bounds = array<i64: 128, 256>}, {pipeline_mode = #tpu.pipeline_mode<synchronous>, transform_indices = @transform_3, window_bounds = array<i64: 1, 256>}, {pipeline_mode = #tpu.pipeline_mode<synchronous>, transform_indices = @transform_4, window_bounds = array<i64: 256, 256>}, {pipeline_mode = #tpu.pipeline_mode<synchronous>, transform_indices = @transform_5, window_bounds = array<i64: 1, 256>}, {transform_indices = @transform_6, window_bounds = array<i64: 8, 256>}]} {
    %c0 = arith.constant 0 : index
    %c0_0 = arith.constant 0 : index
    %0 = vector.load %arg1[%c0, %c0_0] : memref<8x128xf32, #tpu.memory_space<vmem>>, vector<8x128xf32>
    %1 = tpu.iota {dimensions = array<i32: 1>} : vector<8x128xi32>
    %c0_1 = arith.constant 0 : index
    %c0_2 = arith.constant 0 : index
    %2 = vector.load %arg2[%c0_1, %c0_2] : memref<8x1xi32, #tpu.memory_space<vmem>>, vector<8x1xi32>
    %3 = vector.broadcast %2 : vector<8x1xi32> to vector<8x128xi32>
    %4 = arith.cmpi slt, %1, %3 : vector<8x128xi32>
    %cst = arith.constant 0.000000e+00 : f32
    %5 = vector.broadcast %cst : f32 to vector<8x128xf32>
    %6 = arith.select %4, %0, %5 : vector<8x128xi1>, vector<8x128xf32>
    %c0_3 = arith.constant 0 : index
    %c0_4 = arith.constant 0 : index
    %7 = vector.load %arg3[%c0_3, %c0_4] : memref<128x256xf32, #tpu.memory_space<vmem>>, vector<128x256xf32>
    %c0_5 = arith.constant 0 : index
    %c0_6 = arith.constant 0 : index
    %8 = vector.load %arg4[%c0_5, %c0_6] : memref<1x256xf32, #tpu.memory_space<vmem>>, vector<1x256xf32>
    %cst_7 = arith.constant dense<0.000000e+00> : vector<8x256xf32>
    %9 = tpu.matmul %6, %7, %cst_7 {dimension_numbers = #tpu.dot_dimension_numbers<[1], [0], [0], [1], [0, 0, 1, 1], [], []>} : vector<8x128xf32>, vector<128x256xf32>, vector<8x256xf32> -> vector<8x256xf32>
    %10 = vector.broadcast %8 : vector<1x256xf32> to vector<8x256xf32>
    %11 = arith.addf %9, %10 : vector<8x256xf32>
    %cst_8 = arith.constant 5.000000e-01 : f32
    %12 = vector.broadcast %cst_8 : f32 to vector<8x256xf32>
    %13 = arith.mulf %12, %11 : vector<8x256xf32>
    %cst_9 = arith.constant 0.707106769 : f32
    %14 = vector.broadcast %cst_9 : f32 to vector<8x256xf32>
    %15 = arith.mulf %11, %14 : vector<8x256xf32>
    %16 = math.erf %15 : vector<8x256xf32>
    %cst_10 = arith.constant 1.000000e+00 : f32
    %17 = vector.broadcast %cst_10 : f32 to vector<8x256xf32>
    %18 = arith.addf %17, %16 : vector<8x256xf32>
    %19 = arith.mulf %13, %18 : vector<8x256xf32>
    %c0_11 = arith.constant 0 : index
    %c0_12 = arith.constant 0 : index
    %20 = vector.load %arg5[%c0_11, %c0_12] : memref<256x256xf32, #tpu.memory_space<vmem>>, vector<256x256xf32>
    %c0_13 = arith.constant 0 : index
    %c0_14 = arith.constant 0 : index
    %21 = vector.load %arg6[%c0_13, %c0_14] : memref<1x256xf32, #tpu.memory_space<vmem>>, vector<1x256xf32>
    %cst_15 = arith.constant dense<0.000000e+00> : vector<8x256xf32>
    %22 = tpu.matmul %19, %20, %cst_15 {dimension_numbers = #tpu.dot_dimension_numbers<[1], [0], [0], [1], [0, 0, 1, 1], [], []>} : vector<8x256xf32>, vector<256x256xf32>, vector<8x256xf32> -> vector<8x256xf32>
    %23 = vector.broadcast %21 : vector<1x256xf32> to vector<8x256xf32>
    %24 = arith.addf %22, %23 : vector<8x256xf32>
    %c0_16 = arith.constant 0 : index
    %c0_17 = arith.constant 0 : index
    %25 = vector.load %arg7[%c0_16, %c0_17] : memref<8x256xf32, #tpu.memory_space<vmem>>, vector<8x256xf32>
    tpu.vector_store %arg7[%c0_16, %c0_17], %24 {strides = array<i32>} : memref<8x256xf32, #tpu.memory_space<vmem>>, vector<8x256xf32>,
    return
  }
  func.func @transform_0(%arg0: i32) -> (i32, i32) {
    %c0_i32 = arith.constant 0 : i32
    %c0_i32_0 = arith.constant 0 : i32
    return %arg0, %c0_i32 : i32, i32
  }
  func.func @transform_1(%arg0: i32) -> (i32, i32) {
    %c0_i32 = arith.constant 0 : i32
    %c0_i32_0 = arith.constant 0 : i32
    return %arg0, %c0_i32 : i32, i32
  }
  func.func @transform_2(%arg0: i32) -> (i32, i32) {
    %c0_i32 = arith.constant 0 : i32
    %c0_i32_0 = arith.constant 0 : i32
    %c0_i32_1 = arith.constant 0 : i32
    return %c0_i32, %c0_i32_0 : i32, i32
  }
  func.func @transform_3(%arg0: i32) -> (i32, i32) {
    %c0_i32 = arith.constant 0 : i32
    %c0_i32_0 = arith.constant 0 : i32
    %c0_i32_1 = arith.constant 0 : i32
    return %c0_i32, %c0_i32_0 : i32, i32
  }
  func.func @transform_4(%arg0: i32) -> (i32, i32) {
    %c0_i32 = arith.constant 0 : i32
    %c0_i32_0 = arith.constant 0 : i32
    %c0_i32_1 = arith.constant 0 : i32
    return %c0_i32, %c0_i32_0 : i32, i32
  }
  func.func @transform_5(%arg0: i32) -> (i32, i32) {
    %c0_i32 = arith.constant 0 : i32
    %c0_i32_0 = arith.constant 0 : i32
    %c0_i32_1 = arith.constant 0 : i32
    return %c0_i32, %c0_i32_0 : i32, i32
  }
  func.func @transform_6(%arg0: i32) -> (i32, i32) {
    %c0_i32 = arith.constant 0 : i32
    %c0_i32_0 = arith.constant 0 : i32
    return %arg0, %c0_i32 : i32, i32
  }
}

</mosaic_0001>

<llo_original>
// kernel: custom-call.1
$region0: #{custom-call.1}
  %s0 = inlined_call_operand.vmem [shape: u32[16], index: 0, kind: output, shape index: {}]

// kernel: _embed_full.1
$region0: #{_embed_full.1}
  #allocation0 [shape = 'u32[]', space=smem, size = 0x4, offset = 0x4, fixed_abs, tag = 'smem constant byte address 0x4 - core index']
  #allocation1 [shape = 'u32[144,128]{1,0:T(1,128)}', space=vmem, size = 0x12000, scoped, tag = 'internal scratch']
  %s0 = inlined_call_operand.vmem [shape: f32[8,128], index: 0, kind: input, shape index: {}]
  %s1 = inlined_call_operand.vmem [shape: s32[8,1], index: 1, kind: input, shape index: {}]
  %s2 = inlined_call_operand.hbm [shape: f32[128,256], index: 2, kind: input, shape index: {}]
  %s3 = inlined_call_operand.vmem [shape: f32[1,256], index: 3, kind: input, shape index: {}]
  %s4 = inlined_call_operand.hbm [shape: f32[256,256], index: 4, kind: input, shape index: {}]
  %s5 = inlined_call_operand.vmem [shape: f32[1,256], index: 5, kind: input, shape index: {}]
  %s6 = inlined_call_operand.vmem [shape: f32[8,256], index: 6, kind: output, shape index: {}]
  %s7 = sld [smem:[#allocation0]]
  $region42: #{_embed_full.1} parent=0
    _
  %s9 = ssub.s32 1, %s7
  %s10 = scalar_select 0, %s9, %s7
  $region1: #{_embed_full.1} parent=0
    #allocation2 [shape = 'u8[131072]{0}', space=vmem, size = 0x20000, scoped, tag = 'input window, operand 2, single buffered']
    #allocation3 [shape = 's32[1]{0}', space=sflag, size = 0x4, scoped, tag = 'scoped memory for _embed_full.1']
    #allocation4 [shape = 'u8[262144]{0}', space=vmem, size = 0x40000, scoped, tag = 'input window, operand 4, single buffered']
    #allocation5 [shape = 's32[1]{0}', space=sflag, size = 0x4, scoped, tag = 'scoped memory for _embed_full.1']
    %11 = vsyncpa [#allocation3], 0
    %12 = vsyncpa [#allocation5], 0
    // Predicated region
    $region2: #{_embed_full.1} parent=1 // pred_check
      _
    $region3: #{_embed_full.1} parent=1 // pred_check_branch
      %14 = sbr.rel (0) target = $region5
    $region4: #{_embed_full.1} parent=1 // pred_region
      _
    $region5: #{_embed_full.1} parent=1 // pred_fallthru
      _
    // Predicated region
    $region6: #{_embed_full.1} parent=1 // pred_check
      _
    $region7: #{_embed_full.1} parent=1 // pred_check_branch
      %16 = sbr.rel (0) target = $region9
    $region8: #{_embed_full.1} parent=1 // pred_region
      _
    $region9: #{_embed_full.1} parent=1 // pred_fallthru
      _
    // Predicated region
    $region10: #{_embed_full.1} parent=1 // pred_check
      _
    $region11: #{_embed_full.1} parent=1 // pred_check_branch
      %18 = sbr.rel (0) target = $region13
    $region12: #{_embed_full.1} parent=1 // pred_region
      %s20 = ssub.s32 4096, 4096
      %21 = vsyncadd [#allocation3], %s20
      %s22 = sshll.u32 [#allocation2], 4
      %s23 = int_to_ptr.vmem [resolvable:$true] %s22
      %28 = dma.hbm_to_vmem [thread:$0]  %s2, 4096, %s23, [#allocation3], 256, 256, 16
    $region13: #{_embed_full.1} parent=1 // pred_fallthru
      _
    // Predicated region
    $region14: #{_embed_full.1} parent=1 // pred_check
      _
    $region15: #{_embed_full.1} parent=1 // pred_check_branch
      %30 = sbr.rel (0) target = $region17
    $region16: #{_embed_full.1} parent=1 // pred_region
      _
    $region17: #{_embed_full.1} parent=1 // pred_fallthru
      _
    // Predicated region
    $region18: #{_embed_full.1} parent=1 // pred_check
      _
    $region19: #{_embed_full.1} parent=1 // pred_check_branch
      %32 = sbr.rel (0) target = $region21
    $region20: #{_embed_full.1} parent=1 // pred_region
      %s34 = ssub.s32 8192, 8192
      %35 = vsyncadd [#allocation5], %s34
      %s36 = sshll.u32 [#allocation4], 4
      %s37 = int_to_ptr.vmem [resolvable:$true] %s36
      %42 = dma.hbm_to_vmem [thread:$0]  %s4, 8192, %s37, [#allocation5], 256, 256, 16
    $region21: #{_embed_full.1} parent=1 // pred_fallthru
      _
    // Predicated region
    $region22: #{_embed_full.1} parent=1 // pred_check
      _
    $region23: #{_embed_full.1} parent=1 // pred_check_branch
      %44 = sbr.rel (0) target = $region25
    $region24: #{_embed_full.1} parent=1 // pred_region
      _
    $region25: #{_embed_full.1} parent=1 // pred_fallthru
      _
    // Predicated region
    $region26: #{_embed_full.1} parent=1 // pred_check
      _
    $region27: #{_embed_full.1} parent=1 // pred_check_branch
      %46 = sbr.rel (0) target = $region29
    $region28: #{_embed_full.1} parent=1 // pred_region
      %47 = dma.done [#allocation3], 4096
    $region29: #{_embed_full.1} parent=1 // pred_fallthru
      _
    // Predicated region
    $region30: #{_embed_full.1} parent=1 // pred_check
      _
    $region31: #{_embed_full.1} parent=1 // pred_check_branch
      %49 = sbr.rel (0) target = $region33
    $region32: #{_embed_full.1} parent=1 // pred_region
      %50 = dma.done [#allocation5], 8192
    $region33: #{_embed_full.1} parent=1 // pred_fallthru
      _
    %v51 = vld [vmem:[%s0] sm:$0xff]
    %v52 = vlaneseq
    %v53 = vand.u32 %v52, 127
    %v54 = vld [vmem:[%s1] sm:$0xff]
    %55 = vset.pattern.permute.xlu0 0
    %56 = vperm.xlu0 %55, %v54
    %v57 = vpop.permute.xlu0 %56
    %vm58 = vcmp.lt.s32.totalorder %v53, %v57
    %v59 = vsel %vm58, %v51, 0.0
    %v60 = vld [vmem:[#allocation2] sm:$0xff]
    %v61 = vld [vmem:[#allocation2 + $0x8] sm:$0xff]
    %v62 = vld [vmem:[#allocation2 + $0x10] sm:$0xff]
    %v63 = vld [vmem:[#allocation2 + $0x18] sm:$0xff]
    %v64 = vld [vmem:[#allocation2 + $0x20] sm:$0xff]
    %v65 = vld [vmem:[#allocation2 + $0x28] sm:$0xff]
    %v66 = vld [vmem:[#allocation2 + $0x30] sm:$0xff]
    %v67 = vld [vmem:[#allocation2 + $0x38] sm:$0xff]
    %v68 = vld [vmem:[#allocation2 + $0x40] sm:$0xff]
    %v69 = vld [vmem:[#allocation2 + $0x48] sm:$0xff]
    %v70 = vld [vmem:[#allocation2 + $0x50] sm:$0xff]
    %v71 = vld [vmem:[#allocation2 + $0x58] sm:$0xff]
    %v72 = vld [vmem:[#allocation2 + $0x60] sm:$0xff]
    %v73 = vld [vmem:[#allocation2 + $0x68] sm:$0xff]
    %v74 = vld [vmem:[#allocation2 + $0x70] sm:$0xff]
    %v75 = vld [vmem:[#allocation2 + $0x78] sm:$0xff]
    %v76 = vld [vmem:[#allocation2 + $0x80] sm:$0xff]
    %v77 = vld [vmem:[#allocation2 + $0x88] sm:$0xff]
    %v78 = vld [vmem:[#allocation2 + $0x90] sm:$0xff]
    %v79 = vld [vmem:[#allocation2 + $0x98] sm:$0xff]
    %v80 = vld [vmem:[#allocation2 + $0xa0] sm:$0xff]
    %v81 = vld [vmem:[#allocation2 + $0xa8] sm:$0xff]
    %v82 = vld [vmem:[#allocation2 + $0xb0] sm:$0xff]
    %v83 = vld [vmem:[#allocation2 + $0xb8] sm:$0xff]
    %v84 = vld [vmem:[#allocation2 + $0xc0] sm:$0xff]
    %v85 = vld [vmem:[#allocation2 + $0xc8] sm:$0xff]
    %v86 = vld [vmem:[#allocation2 + $0xd0] sm:$0xff]
    %v87 = vld [vmem:[#allocation2 + $0xd8] sm:$0xff]
    %v88 = vld [vmem:[#allocation2 + $0xe0] sm:$0xff]
    %v89 = vld [vmem:[#allocation2 + $0xe8] sm:$0xff]
    %v90 = vld [vmem:[#allocation2 + $0xf0] sm:$0xff]
    %v91 = vld [vmem:[#allocation2 + $0xf8] sm:$0xff]
    %v92 = vld [vmem:[%s3] sm:$0x3]
    %v94 = vlaneseq
    %v95 = vshrl.u32 %v94, 7
    %v96 = vsub.s32 0, %v95
    %v97 = vrot.slane %v92, %v96
    %v98 = vlaneseq
    %v99 = vshrl.u32 %v98, 7
    %v100 = vsub.s32 1, %v99
    %v101 = vrot.slane %v92, %v100
    %104 = vmatprep.subr.mxu0 %v61
    %105 = vmatpush1.msra.mxu0 %v60
    %106 = vmatprep.subr.mxu0 %v63
    %107 = vmatpush1.msra.mxu0 %v62
    %108 = vmatprep.subr.mxu0 %v65
    %109 = vmatpush1.msra.mxu0 %v64
    %110 = vmatprep.subr.mxu0 %v67
    %111 = vmatpush1.msra.mxu0 %v66
    %112 = vmatprep.subr.mxu0 %v69
    %113 = vmatpush1.msra.mxu0 %v68
    %114 = vmatprep.subr.mxu0 %v71
    %115 = vmatpush1.msra.mxu0 %v70
    %116 = vmatprep.subr.mxu0 %v73
    %117 = vmatpush1.msra.mxu0 %v72
    %118 = vmatprep.subr.mxu0 %v75
    %119 = vmatpush1.msra.mxu0 %v74
    %120 = vmatprep.subr.mxu0 %v77
    %121 = vmatpush1.msra.mxu0 %v76
    %122 = vmatprep.subr.mxu0 %v79
    %123 = vmatpush1.msra.mxu0 %v78
    %124 = vmatprep.subr.mxu0 %v81
    %125 = vmatpush1.msra.mxu0 %v80
    %126 = vmatprep.subr.mxu0 %v83
    %127 = vmatpush1.msra.mxu0 %v82
    %128 = vmatprep.subr.mxu0 %v85
    %129 = vmatpush1.msra.mxu0 %v84
    %130 = vmatprep.subr.mxu0 %v87
    %131 = vmatpush1.msra.mxu0 %v86
    %132 = vmatprep.subr.mxu0 %v89
    %133 = vmatpush1.msra.mxu0 %v88
    %134 = vmatprep.subr.mxu0 %v91
    %135 = vmatpush1.msra.mxu0 %v90
    %136 = vmatprep.subr.mxu0 0.0
    %137 = vmatpush1.msra.mxu0 0.0
    %138 = vmatprep.subr.mxu0 0.0
    %139 = vmatpush1.msra.mxu0 0.0
    %140 = vmatprep.subr.mxu0 0.0
    %141 = vmatpush1.msra.mxu0 0.0
    %142 = vmatprep.subr.mxu0 0.0
    %143 = vmatpush1.msra.mxu0 0.0
    %144 = vmatprep.subr.mxu0 0.0
    %145 = vmatpush1.msra.mxu0 0.0
    %146 = vmatprep.subr.mxu0 0.0
    %147 = vmatpush1.msra.mxu0 0.0
    %148 = vmatprep.subr.mxu0 0.0
    %149 = vmatpush1.msra.mxu0 0.0
    %150 = vmatprep.subr.mxu0 0.0
    %151 = vmatpush1.msra.mxu0 0.0
    %152 = vmatprep.subr.mxu0 0.0
    %153 = vmatpush1.msra.mxu0 0.0
    %154 = vmatprep.subr.mxu0 0.0
    %155 = vmatpush1.msra.mxu0 0.0
    %156 = vmatprep.subr.mxu0 0.0
    %157 = vmatpush1.msra.mxu0 0.0
    %158 = vmatprep.subr.mxu0 0.0
    %159 = vmatpush1.msra.mxu0 0.0
    %160 = vmatprep.subr.mxu0 0.0
    %161 = vmatpush1.msra.mxu0 0.0
    %162 = vmatprep.subr.mxu0 0.0
    %163 = vmatpush1.msra.mxu0 0.0
    %164 = vmatprep.subr.mxu0 0.0
    %165 = vmatpush1.msra.mxu0 0.0
    %166 = vmatprep.subr.mxu0 0.0
    %167 = vmatpush1.msra.mxu0 0.0
    %168 = vmatprep.mubr.f32.mxu0 0.0
    %169 = vmatmul.mubr.f32.gmra.mrb[0].mxu0 %v59
    %v170 = vpop.f32.mrb[0].mxu0
    %v171 = vadd.f32 %v97, %v170
    %v172 = vpop.f32.mrb[0].mxu0
    %v173 = vadd.f32 %v101, %v172
    %174 = vdwg.mxu0
    %v175 = vmul.f32 %v171, 0.5
    %v176 = vmul.f32 %v173, 0.5
    %v177 = vmul.f32 %v171, 0.70710677
    %v178 = vmul.f32 %v173, 0.70710677
    %v179 = verf.f32.pop %v177
    %v180 = verf.f32.pop %v178
    %v181 = vadd.f32 %v179, 1.0
    %v182 = vadd.f32 %v180, 1.0
    %v183 = vmul.f32 %v175, %v181
    %v184 = vmul.f32 %v176, %v182
    %v185 = vld [vmem:[#allocation4] sm:$0xff]
    %v186 = vld [vmem:[#allocation4 + $0x8] sm:$0xff]
    %v187 = vld [vmem:[#allocation4 + $0x10] sm:$0xff]
    %v188 = vld [vmem:[#allocation4 + $0x18] sm:$0xff]
    %v189 = vld [vmem:[#allocation4 + $0x20] sm:$0xff]
    %v190 = vld [vmem:[#allocation4 + $0x28] sm:$0xff]
    %v191 = vld [vmem:[#allocation4 + $0x30] sm:$0xff]
    %v192 = vld [vmem:[#allocation4 + $0x38] sm:$0xff]
    %v193 = vld [vmem:[#allocation4 + $0x40] sm:$0xff]
    %v194 = vld [vmem:[#allocation4 + $0x48] sm:$0xff]
    %v195 = vld [vmem:[#allocation4 + $0x50] sm:$0xff]
    %v196 = vld [vmem:[#allocation4 + $0x58] sm:$0xff]
    %v197 = vld [vmem:[#allocation4 + $0x60] sm:$0xff]
    %v198 = vld [vmem:[#allocation4 + $0x68] sm:$0xff]
    %v199 = vld [vmem:[#allocation4 + $0x70] sm:$0xff]
    %v200 = vld [vmem:[#allocation4 + $0x78] sm:$0xff]
    %v201 = vld [vmem:[#allocation4 + $0x80] sm:$0xff]
    %v202 = vld [vmem:[#allocation4 + $0x88] sm:$0xff]
    %v203 = vld [vmem:[#allocation4 + $0x90] sm:$0xff]
    %v204 = vld [vmem:[#allocation4 + $0x98] sm:$0xff]
    %v205 = vld [vmem:[#allocation4 + $0xa0] sm:$0xff]
    %v206 = vld [vmem:[#allocation4 + $0xa8] sm:$0xff]
    %v207 = vld [vmem:[#allocation4 + $0xb0] sm:$0xff]
    %v208 = vld [vmem:[#allocation4 + $0xb8] sm:$0xff]
    %v209 = vld [vmem:[#allocation4 + $0xc0] sm:$0xff]
    %v210 = vld [vmem:[#allocation4 + $0xc8] sm:$0xff]
    %v211 = vld [vmem:[#allocation4 + $0xd0] sm:$0xff]
    %v212 = vld [vmem:[#allocation4 + $0xd8] sm:$0xff]
    %v213 = vld [vmem:[#allocation4 + $0xe0] sm:$0xff]
    %v214 = vld [vmem:[#allocation4 + $0xe8] sm:$0xff]
    %v215 = vld [vmem:[#allocation4 + $0xf0] sm:$0xff]
    %v216 = vld [vmem:[#allocation4 + $0xf8] sm:$0xff]
    %v217 = vld [vmem:[#allocation4 + $0x100] sm:$0xff]
    %v218 = vld [vmem:[#allocation4 + $0x108] sm:$0xff]
    %v219 = vld [vmem:[#allocation4 + $0x110] sm:$0xff]
    %v220 = vld [vmem:[#allocation4 + $0x118] sm:$0xff]
    %v221 = vld [vmem:[#allocation4 + $0x120] sm:$0xff]
    %v222 = vld [vmem:[#allocation4 + $0x128] sm:$0xff]
    %v223 = vld [vmem:[#allocation4 + $0x130] sm:$0xff]
    %v224 = vld [vmem:[#allocation4 + $0x138] sm:$0xff]
    %v225 = vld [vmem:[#allocation4 + $0x140] sm:$0xff]
    %v226 = vld [vmem:[#allocation4 + $0x148] sm:$0xff]
    %v227 = vld [vmem:[#allocation4 + $0x150] sm:$0xff]
    %v228 = vld [vmem:[#allocation4 + $0x158] sm:$0xff]
    %v229 = vld [vmem:[#allocation4 + $0x160] sm:$0xff]
    %v230 = vld [vmem:[#allocation4 + $0x168] sm:$0xff]
    %v231 = vld [vmem:[#allocation4 + $0x170] sm:$0xff]
    %v232 = vld [vmem:[#allocation4 + $0x178] sm:$0xff]
    %v233 = vld [vmem:[#allocation4 + $0x180] sm:$0xff]
    %v234 = vld [vmem:[#allocation4 + $0x188] sm:$0xff]
    %v235 = vld [vmem:[#allocation4 + $0x190] sm:$0xff]
    %v236 = vld [vmem:[#allocation4 + $0x198] sm:$0xff]
    %v237 = vld [vmem:[#allocation4 + $0x1a0] sm:$0xff]
    %v238 = vld [vmem:[#allocation4 + $0x1a8] sm:$0xff]
    %v239 = vld [vmem:[#allocation4 + $0x1b0] sm:$0xff]
    %v240 = vld [vmem:[#allocation4 + $0x1b8] sm:$0xff]
    %v241 = vld [vmem:[#allocation4 + $0x1c0] sm:$0xff]
    %v242 = vld [vmem:[#allocation4 + $0x1c8] sm:$0xff]
    %v243 = vld [vmem:[#allocation4 + $0x1d0] sm:$0xff]
    %v244 = vld [vmem:[#allocation4 + $0x1d8] sm:$0xff]
    %v245 = vld [vmem:[#allocation4 + $0x1e0] sm:$0xff]
    %v246 = vld [vmem:[#allocation4 + $0x1e8] sm:$0xff]
    %v247 = vld [vmem:[#allocation4 + $0x1f0] sm:$0xff]
    %v248 = vld [vmem:[#allocation4 + $0x1f8] sm:$0xff]
    %v249 = vld [vmem:[%s5] sm:$0x3]
    %v251 = vlaneseq
    %v252 = vshrl.u32 %v251, 7
    %v253 = vsub.s32 0, %v252
    %v254 = vrot.slane %v249, %v253
    %v255 = vlaneseq
    %v256 = vshrl.u32 %v255, 7
    %v257 = vsub.s32 1, %v256
    %v258 = vrot.slane %v249, %v257
    %261 = vmatprep.subr.mxu0 %v186
    %262 = vmatpush1.msra.mxu0 %v185
    %263 = vmatprep.subr.mxu0 %v188
    %264 = vmatpush1.msra.mxu0 %v187
    %265 = vmatprep.subr.mxu0 %v190
    %266 = vmatpush1.msra.mxu0 %v189
    %267 = vmatprep.subr.mxu0 %v192
    %268 = vmatpush1.msra.mxu0 %v191
    %269 = vmatprep.subr.mxu0 %v194
    %270 = vmatpush1.msra.mxu0 %v193
    %271 = vmatprep.subr.mxu0 %v196
    %272 = vmatpush1.msra.mxu0 %v195
    %273 = vmatprep.subr.mxu0 %v198
    %274 = vmatpush1.msra.mxu0 %v197
    %275 = vmatprep.subr.mxu0 %v200
    %276 = vmatpush1.msra.mxu0 %v199
    %277 = vmatprep.subr.mxu0 %v202
    %278 = vmatpush1.msra.mxu0 %v201
    %279 = vmatprep.subr.mxu0 %v204
    %280 = vmatpush1.msra.mxu0 %v203
    %281 = vmatprep.subr.mxu0 %v206
    %282 = vmatpush1.msra.mxu0 %v205
    %283 = vmatprep.subr.mxu0 %v208
    %284 = vmatpush1.msra.mxu0 %v207
    %285 = vmatprep.subr.mxu0 %v210
    %286 = vmatpush1.msra.mxu0 %v209
    %287 = vmatprep.subr.mxu0 %v212
    %288 = vmatpush1.msra.mxu0 %v211
    %289 = vmatprep.subr.mxu0 %v214
    %290 = vmatpush1.msra.mxu0 %v213
    %291 = vmatprep.subr.mxu0 %v216
    %292 = vmatpush1.msra.mxu0 %v215
    %293 = vmatprep.subr.mxu0 %v218
    %294 = vmatpush1.msra.mxu0 %v217
    %295 = vmatprep.subr.mxu0 %v220
    %296 = vmatpush1.msra.mxu0 %v219
    %297 = vmatprep.subr.mxu0 %v222
    %298 = vmatpush1.msra.mxu0 %v221
    %299 = vmatprep.subr.mxu0 %v224
    %300 = vmatpush1.msra.mxu0 %v223
    %301 = vmatprep.subr.mxu0 %v226
    %302 = vmatpush1.msra.mxu0 %v225
    %303 = vmatprep.subr.mxu0 %v228
    %304 = vmatpush1.msra.mxu0 %v227
    %305 = vmatprep.subr.mxu0 %v230
    %306 = vmatpush1.msra.mxu0 %v229
    %307 = vmatprep.subr.mxu0 %v232
    %308 = vmatpush1.msra.mxu0 %v231
    %309 = vmatprep.subr.mxu0 %v234
    %310 = vmatpush1.msra.mxu0 %v233
    %311 = vmatprep.subr.mxu0 %v236
    %312 = vmatpush1.msra.mxu0 %v235
    %313 = vmatprep.subr.mxu0 %v238
    %314 = vmatpush1.msra.mxu0 %v237
    %315 = vmatprep.subr.mxu0 %v240
    %316 = vmatpush1.msra.mxu0 %v239
    %317 = vmatprep.subr.mxu0 %v242
    %318 = vmatpush1.msra.mxu0 %v241
    %319 = vmatprep.subr.mxu0 %v244
    %320 = vmatpush1.msra.mxu0 %v243
    %321 = vmatprep.subr.mxu0 %v246
    %322 = vmatpush1.msra.mxu0 %v245
    %323 = vmatprep.subr.mxu0 %v248
    %324 = vmatpush1.msra.mxu0 %v247
    %325 = vmatprep.mubr.f32.mxu0 %v184
    %326 = vmatmul.mubr.f32.gmra.mrb[0].mxu0 %v183
    %v327 = vpop.f32.mrb[0].mxu0
    %v328 = vadd.f32 %v254, %v327
    %v329 = vpop.f32.mrb[0].mxu0
    %v330 = vadd.f32 %v258, %v329
    %331 = vdwg.mxu0
    %332 = vst [vmem:[%s6] sm:$0xff] %v328
    %333 = vst [vmem:[%s6 + $0x8] sm:$0xff] %v330
    // Predicated region
    $region34: #{_embed_full.1} parent=1 // pred_check
      _
    $region35: #{_embed_full.1} parent=1 // pred_check_branch
      %335 = sbr.rel (0) target = $region37
    $region36: #{_embed_full.1} parent=1 // pred_region
      _
    $region37: #{_embed_full.1} parent=1 // pred_fallthru
      _
    // Predicated region
    $region38: #{_embed_full.1} parent=1 // pred_check
      _
    $region39: #{_embed_full.1} parent=1 // pred_check_branch
      %337 = sbr.rel (0) target = $region41
    $region40: #{_embed_full.1} parent=1 // pred_region
      _
    $region41: #{_embed_full.1} parent=1 // pred_fallthru
      _
    %338 = vsyncpa [#allocation3], 1
    %339 = vsyncpa [#allocation5], 1

</llo_original>
